<compile_context>
chip_gen: v7x
topology: tpu7x:2x2x1
jax: 0.10.0
libtpu: 0.0.40
codegen_flags: <defaults>
</compile_context>

<pallas_src>
import functools

import jax
import jax.numpy as jnp
from jax.experimental import pallas as pl
from jax.experimental.pallas import tpu as pltpu


def mlp_kernel(x_ref, w1_ref, b1_ref, w2_ref, b2_ref, w3_ref, b3_ref, o_ref):
    """Fused 3-layer MLP on one batch tile: (Linear -> ReLU) x2 -> Linear.

    x arrives f32 and is cast to bf16 after the DMA; matmuls accumulate in f32 on the MXU;
    bias add + ReLU stay f32; output is stored as a lane-dense bf16 slab.
    """
    x = x_ref[...].astype(jnp.bfloat16)  # in-kernel cast: no extra HBM pass over x

    # Layer 1: Linear + ReLU
    h = jnp.dot(x, w1_ref[...], preferred_element_type=jnp.float32) + b1_ref[...]
    h = jnp.maximum(h, 0.0)

    # Layer 2: Linear + ReLU
    h = jnp.dot(h.astype(jnp.bfloat16), w2_ref[...],
                preferred_element_type=jnp.float32) + b2_ref[...]
    h = jnp.maximum(h, 0.0)

    # Layer 3 (output head): Linear, no activation.  128-lane-dense bf16 slab (unmasked vst).
    # TODO(synk): pack 8 batch rows x 16 real outputs into one 128-lane row ([tb/8, 128]) to cut
    # output HBM bytes another 4x; needs an in-kernel [tb,16]->[tb/8,128] relayout.
    o = jnp.dot(h.astype(jnp.bfloat16), w3_ref[...],
                preferred_element_type=jnp.float32) + b3_ref[...]
    o_ref[...] = o.astype(o_ref.dtype)


def _round_up(v, m):
    return -(-v // m) * m


def _choose_tile_batch(batch, target=4096):
    """Pick the batch tile.

    Big tiles amortize the ~0.35 us/grid-step overhead (VMEM footprint at tb=4096 is ~10 MiB,
    well under the 32 MiB scoped default on every generation), but keep the grid >= 2 when
    there is enough work so the "parallel" axis can use both v7x TensorCores.
    """
    if batch <= 256:
        # Single full-dim tile (always layout-legal); nothing worth splitting at this size.
        return batch
    half = _round_up(_round_up(batch, 2) // 2, 16)  # 16-row multiple (bf16 sublane packing)
    return min(target, half)


def simple_dnn_forward(x, w1, b1, w2, b2, w3p, b3p, *, out_features, tile_batch=None):
    """Run the fused MLP Pallas kernel.

    x: [B, num_input_features] f32.  Weights come from prepare_params(): bf16, [in, out],
    with the final layer pre-padded to a multiple of 128 output lanes.
    """
    batch, in_features = x.shape
    hidden = w1.shape[1]
    out_pad = w3p.shape[1]

    tb = tile_batch if tile_batch is not None else _choose_tile_batch(batch)
    grid = (pl.cdiv(batch, tb),)

    flops = 2 * batch * (in_features * hidden + hidden * hidden + hidden * out_pad)
    bytes_accessed = (
        x.size * 4                                   # f32 x read (once)
        + w1.size * 2 + w2.size * 2 + w3p.size * 2   # bf16 weights (resident, read once)
        + b1.size * 4 + b2.size * 4 + b3p.size * 4   # f32 biases
        + batch * out_pad * 2                        # bf16 output slab
    )

    out = pl.pallas_call(
        mlp_kernel,
        out_shape=jax.ShapeDtypeStruct((batch, out_pad), jnp.bfloat16),
        grid_spec=pltpu.PrefetchScalarGridSpec(
            num_scalar_prefetch=0,
            grid=grid,
            in_specs=[
                pl.BlockSpec((tb, in_features), lambda i: (i, 0)),      # x: tiled over batch
                pl.BlockSpec((in_features, hidden), lambda i: (0, 0)),  # w1: VMEM-resident
                pl.BlockSpec((1, hidden), lambda i: (0, 0)),            # b1: resident
                pl.BlockSpec((hidden, hidden), lambda i: (0, 0)),       # w2: resident
                pl.BlockSpec((1, hidden), lambda i: (0, 0)),            # b2: resident
                pl.BlockSpec((hidden, out_pad), lambda i: (0, 0)),      # w3 (padded): resident
                pl.BlockSpec((1, out_pad), lambda i: (0, 0)),           # b3 (padded): resident
            ],
            out_specs=pl.BlockSpec((tb, out_pad), lambda i: (i, 0)),    # lane-dense bf16 slab
        ),
        compiler_params=pltpu.CompilerParams(
            dimension_semantics=("parallel",),       # batch tiles across TCs on v7x
            vmem_limit_bytes=32 * 1024 * 1024,
        ),
        cost_estimate=pl.CostEstimate(
            flops=flops, transcendentals=0, bytes_accessed=bytes_accessed),
    )(x, w1, b1, w2, b2, w3p, b3p)

    # Drop lane padding; return f32 like the PyTorch module's default dtype.
    return out[:, :out_features].astype(jnp.float32)


def prepare_params(params):
    """One-time (per-model) prep: bf16 weight casts + pad the final layer to 128 output lanes.

    Hoisted out of the forward so per-call HLO dispatch count stays minimal.
    """
    (w1, b1), (w2, b2), (w3, b3) = params
    hidden, out_features = w3.shape
    out_pad = max(128, _round_up(out_features, 128))
    w3p = jnp.zeros((hidden, out_pad), jnp.bfloat16).at[:, :out_features].set(
        w3.astype(jnp.bfloat16))
    b3p = jnp.zeros((1, out_pad), jnp.float32).at[:, :out_features].set(
        b3.astype(jnp.float32))
    kernel_params = (
        w1.astype(jnp.bfloat16), b1.astype(jnp.float32),
        w2.astype(jnp.bfloat16), b2.astype(jnp.float32),
        w3p, b3p,
    )
    return kernel_params, out_features


def init_params(key, num_input_features, num_output_features, hidden_size=64):
    """Deterministic init mimicking torch.nn.Linear default U(-1/sqrt(fan_in), 1/sqrt(fan_in)).

    Weights are stored [in, out] (transposed vs PyTorch's [out, in]) so the kernel does x @ W.
    Biases kept 2-D [1, out] for TPU layout.
    """
    dims = [num_input_features, hidden_size, hidden_size, num_output_features]
    params = []
    for i in range(3):
        fan_in, fan_out = dims[i], dims[i + 1]
        key, kw, kb = jax.random.split(key, 3)
        bound = 1.0 / (fan_in ** 0.5)
        w = jax.random.uniform(kw, (fan_in, fan_out), jnp.float32, -bound, bound)
        b = jax.random.uniform(kb, (1, fan_out), jnp.float32, -bound, bound)
        params.append((w, b))
    return params


def reference_forward(x, params):
    """Pure-JAX reference with the same bf16-input / f32-accumulate / bf16-store numerics."""
    (w1, b1), (w2, b2), (w3, b3) = params

    def lin(h, w, b):
        return jnp.dot(h.astype(jnp.bfloat16), w.astype(jnp.bfloat16),
                       preferred_element_type=jnp.float32) + b

    h = jnp.maximum(lin(x, w1, b1), 0.0)
    h = jnp.maximum(lin(h, w2, b2), 0.0)
    o = lin(h, w3, b3)
    return o.astype(jnp.bfloat16).astype(jnp.float32)  # kernel stores bf16 slab


if __name__ == "__main__":
    # SimpleDNN(num_input_features=32, num_output_features=16, layers=3, hidden_size=64)
    batch = 8
    num_input_features = 32
    num_output_features = 16
    hidden_size = 64

    key = jax.random.PRNGKey(0)
    key, kx = jax.random.split(key)
    x = jax.random.normal(kx, (batch, num_input_features), jnp.float32)
    params = init_params(key, num_input_features, num_output_features, hidden_size)

    kernel_params, out_features = prepare_params(params)
    fwd = jax.jit(functools.partial(simple_dnn_forward, out_features=out_features))

    out = jax.block_until_ready(fwd(x, *kernel_params))

    ref = reference_forward(x, params)
    assert out.shape == (batch, num_output_features)
    assert jnp.allclose(out, ref, atol=2e-2, rtol=2e-2), "mismatch vs JAX reference"

    print("KERNEL_OK")
</pallas_src>

<mosaic_0001>
module attributes {stable_mosaic.version = 11 : i64} {
  func.func @mlp_kernel(%arg0: i32, %arg1: memref<8x32xf32, #tpu.memory_space<vmem>>, %arg2: memref<32x64xbf16, #tpu.memory_space<vmem>>, %arg3: memref<1x64xf32, #tpu.memory_space<vmem>>, %arg4: memref<64x64xbf16, #tpu.memory_space<vmem>>, %arg5: memref<1x64xf32, #tpu.memory_space<vmem>>, %arg6: memref<64x128xbf16, #tpu.memory_space<vmem>>, %arg7: memref<1x128xf32, #tpu.memory_space<vmem>>, %arg8: memref<8x128xbf16, #tpu.memory_space<vmem>>) attributes {dimension_semantics = [#tpu.dimension_semantics<parallel>], iteration_bounds = array<i64: 1>, scalar_prefetch = 0 : i64, scratch_operands = 0 : i64, tpu.core_type = #tpu.core_type<tc>, window_params = [{transform_indices = @transform_0, window_bounds = array<i64: 8, 32>}, {pipeline_mode = #tpu.pipeline_mode<synchronous>, transform_indices = @transform_1, window_bounds = array<i64: 32, 64>}, {pipeline_mode = #tpu.pipeline_mode<synchronous>, transform_indices = @transform_2, window_bounds = array<i64: 1, 64>}, {pipeline_mode = #tpu.pipeline_mode<synchronous>, transform_indices = @transform_3, window_bounds = array<i64: 64, 64>}, {pipeline_mode = #tpu.pipeline_mode<synchronous>, transform_indices = @transform_4, window_bounds = array<i64: 1, 64>}, {pipeline_mode = #tpu.pipeline_mode<synchronous>, transform_indices = @transform_5, window_bounds = array<i64: 64, 128>}, {pipeline_mode = #tpu.pipeline_mode<synchronous>, transform_indices = @transform_6, window_bounds = array<i64: 1, 128>}, {transform_indices = @transform_7, window_bounds = array<i64: 8, 128>}]} {
    %c0 = arith.constant 0 : index
    %c0_0 = arith.constant 0 : index
    %0 = vector.load %arg1[%c0, %c0_0] : memref<8x32xf32, #tpu.memory_space<vmem>>, vector<8x32xf32>
    %1 = arith.truncf %0 : vector<8x32xf32> to vector<8x32xbf16>
    %c0_1 = arith.constant 0 : index
    %c0_2 = arith.constant 0 : index
    %2 = vector.load %arg2[%c0_1, %c0_2] : memref<32x64xbf16, #tpu.memory_space<vmem>>, vector<32x64xbf16>
    %cst = arith.constant dense<0.000000e+00> : vector<8x64xf32>
    %3 = tpu.matmul %1, %2, %cst {dimension_numbers = #tpu.dot_dimension_numbers<[1], [0], [0], [1], [0, 0, 1, 1], [], []>} : vector<8x32xbf16>, vector<32x64xbf16>, vector<8x64xf32> -> vector<8x64xf32>
    %c0_3 = arith.constant 0 : index
    %c0_4 = arith.constant 0 : index
    %4 = vector.load %arg3[%c0_3, %c0_4] : memref<1x64xf32, #tpu.memory_space<vmem>>, vector<1x64xf32>
    %5 = vector.broadcast %4 : vector<1x64xf32> to vector<8x64xf32>
    %6 = arith.addf %3, %5 : vector<8x64xf32>
    %cst_5 = arith.constant 0.000000e+00 : f32
    %7 = vector.broadcast %cst_5 : f32 to vector<8x64xf32>
    %8 = arith.maximumf %6, %7 : vector<8x64xf32>
    %9 = arith.truncf %8 : vector<8x64xf32> to vector<8x64xbf16>
    %c0_6 = arith.constant 0 : index
    %c0_7 = arith.constant 0 : index
    %10 = vector.load %arg4[%c0_6, %c0_7] : memref<64x64xbf16, #tpu.memory_space<vmem>>, vector<64x64xbf16>
    %cst_8 = arith.constant dense<0.000000e+00> : vector<8x64xf32>
    %11 = tpu.matmul %9, %10, %cst_8 {dimension_numbers = #tpu.dot_dimension_numbers<[1], [0], [0], [1], [0, 0, 1, 1], [], []>} : vector<8x64xbf16>, vector<64x64xbf16>, vector<8x64xf32> -> vector<8x64xf32>
    %c0_9 = arith.constant 0 : index
    %c0_10 = arith.constant 0 : index
    %12 = vector.load %arg5[%c0_9, %c0_10] : memref<1x64xf32, #tpu.memory_space<vmem>>, vector<1x64xf32>
    %13 = vector.broadcast %12 : vector<1x64xf32> to vector<8x64xf32>
    %14 = arith.addf %11, %13 : vector<8x64xf32>
    %cst_11 = arith.constant 0.000000e+00 : f32
    %15 = vector.broadcast %cst_11 : f32 to vector<8x64xf32>
    %16 = arith.maximumf %14, %15 : vector<8x64xf32>
    %17 = arith.truncf %16 : vector<8x64xf32> to vector<8x64xbf16>
    %c0_12 = arith.constant 0 : index
    %c0_13 = arith.constant 0 : index
    %18 = vector.load %arg6[%c0_12, %c0_13] : memref<64x128xbf16, #tpu.memory_space<vmem>>, vector<64x128xbf16>
    %cst_14 = arith.constant dense<0.000000e+00> : vector<8x128xf32>
    %19 = tpu.matmul %17, %18, %cst_14 {dimension_numbers = #tpu.dot_dimension_numbers<[1], [0], [0], [1], [0, 0, 1, 1], [], []>} : vector<8x64xbf16>, vector<64x128xbf16>, vector<8x128xf32> -> vector<8x128xf32>
    %c0_15 = arith.constant 0 : index
    %c0_16 = arith.constant 0 : index
    %20 = vector.load %arg7[%c0_15, %c0_16] : memref<1x128xf32, #tpu.memory_space<vmem>>, vector<1x128xf32>
    %21 = vector.broadcast %20 : vector<1x128xf32> to vector<8x128xf32>
    %22 = arith.addf %19, %21 : vector<8x128xf32>
    %23 = arith.truncf %22 : vector<8x128xf32> to vector<8x128xbf16>
    %c0_17 = arith.constant 0 : index
    %c0_18 = arith.constant 0 : index
    %24 = vector.load %arg8[%c0_17, %c0_18] : memref<8x128xbf16, #tpu.memory_space<vmem>>, vector<8x128xbf16>
    tpu.vector_store %arg8[%c0_17, %c0_18], %23 {strides = array<i32>} : memref<8x128xbf16, #tpu.memory_space<vmem>>, vector<8x128xbf16>,
    return
  }
  func.func @transform_0(%arg0: i32) -> (i32, i32) {
    %c0_i32 = arith.constant 0 : i32
    %c0_i32_0 = arith.constant 0 : i32
    return %arg0, %c0_i32 : i32, i32
  }
  func.func @transform_1(%arg0: i32) -> (i32, i32) {
    %c0_i32 = arith.constant 0 : i32
    %c0_i32_0 = arith.constant 0 : i32
    %c0_i32_1 = arith.constant 0 : i32
    return %c0_i32, %c0_i32_0 : i32, i32
  }
  func.func @transform_2(%arg0: i32) -> (i32, i32) {
    %c0_i32 = arith.constant 0 : i32
    %c0_i32_0 = arith.constant 0 : i32
    %c0_i32_1 = arith.constant 0 : i32
    return %c0_i32, %c0_i32_0 : i32, i32
  }
  func.func @transform_3(%arg0: i32) -> (i32, i32) {
    %c0_i32 = arith.constant 0 : i32
    %c0_i32_0 = arith.constant 0 : i32
    %c0_i32_1 = arith.constant 0 : i32
    return %c0_i32, %c0_i32_0 : i32, i32
  }
  func.func @transform_4(%arg0: i32) -> (i32, i32) {
    %c0_i32 = arith.constant 0 : i32
    %c0_i32_0 = arith.constant 0 : i32
    %c0_i32_1 = arith.constant 0 : i32
    return %c0_i32, %c0_i32_0 : i32, i32
  }
  func.func @transform_5(%arg0: i32) -> (i32, i32) {
    %c0_i32 = arith.constant 0 : i32
    %c0_i32_0 = arith.constant 0 : i32
    %c0_i32_1 = arith.constant 0 : i32
    return %c0_i32, %c0_i32_0 : i32, i32
  }
  func.func @transform_6(%arg0: i32) -> (i32, i32) {
    %c0_i32 = arith.constant 0 : i32
    %c0_i32_0 = arith.constant 0 : i32
    %c0_i32_1 = arith.constant 0 : i32
    return %c0_i32, %c0_i32_0 : i32, i32
  }
  func.func @transform_7(%arg0: i32) -> (i32, i32) {
    %c0_i32 = arith.constant 0 : i32
    %c0_i32_0 = arith.constant 0 : i32
    return %arg0, %c0_i32 : i32, i32
  }
}

</mosaic_0001>

<llo_original>
// kernel: simple_dnn_forward.1
$region0: #{simple_dnn_forward.1}
  #allocation0 [shape = 'u32[]', space=smem, size = 0x4, offset = 0x4, fixed_abs, tag = 'smem constant byte address 0x4 - core index']
  #allocation1 [shape = 'u32[144,128]{1,0:T(1,128)}', space=vmem, size = 0x12000, scoped, tag = 'internal scratch']
  %s0 = inlined_call_operand.hbm [shape: f32[8,32], index: 0, kind: input, shape index: {}]
  %s1 = inlined_call_operand.hbm [shape: bf16[32,64], index: 1, kind: input, shape index: {}]
  %s2 = inlined_call_operand.vmem [shape: f32[1,64], index: 2, kind: input, shape index: {}]
  %s3 = inlined_call_operand.hbm [shape: bf16[64,64], index: 3, kind: input, shape index: {}]
  %s4 = inlined_call_operand.vmem [shape: f32[1,64], index: 4, kind: input, shape index: {}]
  %s5 = inlined_call_operand.hbm [shape: bf16[64,128], index: 5, kind: input, shape index: {}]
  %s6 = inlined_call_operand.vmem [shape: f32[1,128], index: 6, kind: input, shape index: {}]
  %s7 = inlined_call_operand.vmem [shape: bf16[8,128], index: 7, kind: output, shape index: {}]
  %s8 = sld [smem:[#allocation0]]
  $region54: #{simple_dnn_forward.1} parent=0
    _
  %s10 = ssub.s32 1, %s8
  %s11 = scalar_select 0, %s10, %s8
  $region1: #{simple_dnn_forward.1} parent=0
    #allocation2 [shape = 'u8[4096]{0}', space=vmem, size = 0x1000, scoped, tag = 'input window, operand 0, single buffered']
    #allocation3 [shape = 's32[1]{0}', space=sflag, size = 0x4, scoped, tag = 'scoped memory for simple_dnn_forward.1']
    #allocation4 [shape = 'u8[8192]{0}', space=vmem, size = 0x2000, scoped, tag = 'input window, operand 1, single buffered']
    #allocation5 [shape = 's32[1]{0}', space=sflag, size = 0x4, scoped, tag = 'scoped memory for simple_dnn_forward.1']
    #allocation6 [shape = 'u8[16384]{0}', space=vmem, size = 0x4000, scoped, tag = 'input window, operand 3, single buffered']
    #allocation7 [shape = 'u8[16384]{0}', space=vmem, size = 0x4000, scoped, tag = 'input window, operand 5, single buffered']
    #allocation8 [shape = 's32[1]{0}', space=sflag, size = 0x4, scoped, tag = 'scoped memory for simple_dnn_forward.1']
    %12 = vsyncpa [#allocation3], 0
    %13 = vsyncpa [#allocation5], 0
    %14 = vsyncpa [#allocation8], 0
    // Predicated region
    $region2: #{simple_dnn_forward.1} parent=1 // pred_check
      _
    $region3: #{simple_dnn_forward.1} parent=1 // pred_check_branch
      %16 = sbr.rel (0) target = $region5
    $region4: #{simple_dnn_forward.1} parent=1 // pred_region
      %s18 = ssub.s32 128, 128
      %19 = vsyncadd [#allocation3], %s18
      %s21 = sshll.u32 [#allocation2], 4
      %s22 = int_to_ptr.vmem [resolvable:$true] %s21
      %24 = dma.hbm_to_vmem [thread:$0]  %s0, 128, %s22, [#allocation3]
    $region5: #{simple_dnn_forward.1} parent=1 // pred_fallthru
      _
    // Predicated region
    $region6: #{simple_dnn_forward.1} parent=1 // pred_check
      _
    $region7: #{simple_dnn_forward.1} parent=1 // pred_check_branch
      %26 = sbr.rel (0) target = $region9
    $region8: #{simple_dnn_forward.1} parent=1 // pred_region
      %s28 = ssub.s32 256, 256
      %29 = vsyncadd [#allocation5], %s28
      %s30 = sshll.u32 [#allocation4], 4
      %s31 = int_to_ptr.vmem [resolvable:$true] %s30
      %36 = dma.hbm_to_vmem [thread:$0]  %s1, 256, %s31, [#allocation5], 64, 64, 4
    $region9: #{simple_dnn_forward.1} parent=1 // pred_fallthru
      _
    // Predicated region
    $region10: #{simple_dnn_forward.1} parent=1 // pred_check
      _
    $region11: #{simple_dnn_forward.1} parent=1 // pred_check_branch
      %38 = sbr.rel (0) target = $region13
    $region12: #{simple_dnn_forward.1} parent=1 // pred_region
      _
    $region13: #{simple_dnn_forward.1} parent=1 // pred_fallthru
      _
    // Predicated region
    $region14: #{simple_dnn_forward.1} parent=1 // pred_check
      _
    $region15: #{simple_dnn_forward.1} parent=1 // pred_check_branch
      %40 = sbr.rel (0) target = $region17
    $region16: #{simple_dnn_forward.1} parent=1 // pred_region
      %s42 = ssub.s32 512, 512
      %43 = vsyncadd [#allocation5], %s42
      %s44 = sshll.u32 [#allocation6], 4
      %s45 = int_to_ptr.vmem [resolvable:$true] %s44
      %50 = dma.hbm_to_vmem [thread:$0]  %s3, 512, %s45, [#allocation5], 64, 64, 4
    $region17: #{simple_dnn_forward.1} parent=1 // pred_fallthru
      _
    // Predicated region
    $region18: #{simple_dnn_forward.1} parent=1 // pred_check
      _
    $region19: #{simple_dnn_forward.1} parent=1 // pred_check_branch
      %52 = sbr.rel (0) target = $region21
    $region20: #{simple_dnn_forward.1} parent=1 // pred_region
      _
    $region21: #{simple_dnn_forward.1} parent=1 // pred_fallthru
      _
    // Predicated region
    $region22: #{simple_dnn_forward.1} parent=1 // pred_check
      _
    $region23: #{simple_dnn_forward.1} parent=1 // pred_check_branch
      %54 = sbr.rel (0) target = $region25
    $region24: #{simple_dnn_forward.1} parent=1 // pred_region
      %s56 = ssub.s32 512, 512
      %57 = vsyncadd [#allocation8], %s56
      %s58 = sshll.u32 [#allocation7], 4
      %s59 = int_to_ptr.vmem [resolvable:$true] %s58
      %64 = dma.hbm_to_vmem [thread:$0]  %s5, 512, %s59, [#allocation8], 64, 64, 4
    $region25: #{simple_dnn_forward.1} parent=1 // pred_fallthru
      _
    // Predicated region
    $region26: #{simple_dnn_forward.1} parent=1 // pred_check
      _
    $region27: #{simple_dnn_forward.1} parent=1 // pred_check_branch
      %66 = sbr.rel (0) target = $region29
    $region28: #{simple_dnn_forward.1} parent=1 // pred_region
      _
    $region29: #{simple_dnn_forward.1} parent=1 // pred_fallthru
      _
    // Predicated region
    $region30: #{simple_dnn_forward.1} parent=1 // pred_check
      _
    $region31: #{simple_dnn_forward.1} parent=1 // pred_check_branch
      %68 = sbr.rel (0) target = $region33
    $region32: #{simple_dnn_forward.1} parent=1 // pred_region
      %69 = dma.done [#allocation3], 128
    $region33: #{simple_dnn_forward.1} parent=1 // pred_fallthru
      _
    // Predicated region
    $region34: #{simple_dnn_forward.1} parent=1 // pred_check
      _
    $region35: #{simple_dnn_forward.1} parent=1 // pred_check_branch
      %71 = sbr.rel (0) target = $region37
    $region36: #{simple_dnn_forward.1} parent=1 // pred_region
      %72 = dma.done [#allocation5], 256
    $region37: #{simple_dnn_forward.1} parent=1 // pred_fallthru
      _
    // Predicated region
    $region38: #{simple_dnn_forward.1} parent=1 // pred_check
      _
    $region39: #{simple_dnn_forward.1} parent=1 // pred_check_branch
      %74 = sbr.rel (0) target = $region41
    $region40: #{simple_dnn_forward.1} parent=1 // pred_region
      %75 = dma.done [#allocation5], 512
    $region41: #{simple_dnn_forward.1} parent=1 // pred_fallthru
      _
    // Predicated region
    $region42: #{simple_dnn_forward.1} parent=1 // pred_check
      _
    $region43: #{simple_dnn_forward.1} parent=1 // pred_check_branch
      %77 = sbr.rel (0) target = $region45
    $region44: #{simple_dnn_forward.1} parent=1 // pred_region
      %78 = dma.done [#allocation8], 512
    $region45: #{simple_dnn_forward.1} parent=1 // pred_fallthru
      _
    %v80 = vld [vmem:[#allocation2] sm:$0xff]
    %v81 = vpack.c.bf16 %v80, %v80
    %v82 = vld [vmem:[#allocation4] sm:$0xf]
    %v83 = vld [vmem:[#allocation4 + $0x4] sm:$0xf]
    %v84 = vld [vmem:[#allocation4 + $0x8] sm:$0xf]
    %v85 = vld [vmem:[#allocation4 + $0xc] sm:$0xf]
    %v86 = vld [vmem:[%s2] sm:$0x1]
    %v88 = vlaneseq
    %v89 = vshrl.u32 %v88, 7
    %v90 = vsub.s32 0, %v89
    %v91 = vrot.slane %v86, %v90
    %v97 = vunpack.c.l.b16 %v82
    %v98 = vunpack.c.l.b16 %v83
    %v99 = vunpack.c.l.b16 %v84
    %v100 = vunpack.c.l.b16 %v85
    %v101 = vpack.c.b16 %v98, %v97
    %v102 = vpack.c.b16 %v100, %v99
    %vm105 = vcmask 261120
    %v107 = vsel %vm105, %v81, 0
    %109 = vmatprep.subr.bf16.mxu0 0
    %110 = vmatpush1.bf16.msra.mxu0 %v101
    %111 = vmatprep.subr.bf16.mxu0 0
    %112 = vmatpush1.bf16.msra.mxu0 %v102
    %113 = vmatprep.subr.bf16.mxu0 0
    %114 = vmatpush1.bf16.msra.mxu0 0
    %115 = vmatprep.subr.bf16.mxu0 0
    %116 = vmatpush1.bf16.msra.mxu0 0
    %117 = vmatprep.subr.bf16.mxu0 0
    %118 = vmatpush1.bf16.msra.mxu0 0
    %119 = vmatprep.subr.bf16.mxu0 0
    %120 = vmatpush1.bf16.msra.mxu0 0
    %121 = vmatprep.subr.bf16.mxu0 0
    %122 = vmatpush1.bf16.msra.mxu0 0
    %123 = vmatprep.subr.bf16.mxu0 0
    %124 = vmatpush1.bf16.msra.mxu0 0
    %125 = vmatprep.subr.bf16.mxu0 0
    %126 = vmatpush1.bf16.msra.mxu0 0
    %127 = vmatprep.subr.bf16.mxu0 0
    %128 = vmatpush1.bf16.msra.mxu0 0
    %129 = vmatprep.subr.bf16.mxu0 0
    %130 = vmatpush1.bf16.msra.mxu0 0
    %131 = vmatprep.subr.bf16.mxu0 0
    %132 = vmatpush1.bf16.msra.mxu0 0
    %133 = vmatprep.subr.bf16.mxu0 0
    %134 = vmatpush1.bf16.msra.mxu0 0
    %135 = vmatprep.subr.bf16.mxu0 0
    %136 = vmatpush1.bf16.msra.mxu0 0
    %137 = vmatprep.subr.bf16.mxu0 0
    %138 = vmatpush1.bf16.msra.mxu0 0
    %139 = vmatprep.subr.bf16.mxu0 0
    %140 = vmatpush1.bf16.msra.mxu0 0
    %141 = vmatprep.mubr.bf16.mxu0 0
    %142 = vmatmul.mubr.bf16.gmra.mrb[0].mxu0 %v107
    %v143 = vpop.f32.mrb[0].mxu0
    %v144 = vadd.f32 %v91, %v143
    %v145 = vpop.f32.mrb[0].mxu0
    %v146 = vpop.f32.mrb[0].mxu0
    %v147 = vpop.f32.mrb[0].mxu0
    %148 = vdwg.mxu0
    %v149 = vmax.f32 %v144, 0.0
    %v150 = vpack.c.bf16 %v149, %v149
    %v151 = vld [vmem:[#allocation6] sm:$0xf]
    %v152 = vld [vmem:[#allocation6 + $0x4] sm:$0xf]
    %v153 = vld [vmem:[#allocation6 + $0x8] sm:$0xf]
    %v154 = vld [vmem:[#allocation6 + $0xc] sm:$0xf]
    %v155 = vld [vmem:[#allocation6 + $0x10] sm:$0xf]
    %v156 = vld [vmem:[#allocation6 + $0x14] sm:$0xf]
    %v157 = vld [vmem:[#allocation6 + $0x18] sm:$0xf]
    %v158 = vld [vmem:[#allocation6 + $0x1c] sm:$0xf]
    %v159 = vld [vmem:[%s4] sm:$0x1]
    %v161 = vlaneseq
    %v162 = vshrl.u32 %v161, 7
    %v163 = vsub.s32 0, %v162
    %v164 = vrot.slane %v159, %v163
    %v174 = vunpack.c.l.b16 %v151
    %v175 = vunpack.c.l.b16 %v152
    %v176 = vunpack.c.l.b16 %v153
    %v177 = vunpack.c.l.b16 %v154
    %v178 = vunpack.c.l.b16 %v155
    %v179 = vunpack.c.l.b16 %v156
    %v180 = vunpack.c.l.b16 %v157
    %v181 = vunpack.c.l.b16 %v158
    %v182 = vpack.c.b16 %v175, %v174
    %v183 = vpack.c.b16 %v177, %v176
    %v184 = vpack.c.b16 %v179, %v178
    %v185 = vpack.c.b16 %v181, %v180
    %vm190 = vcmask 523264
    %v192 = vsel %vm190, %v150, 0
    %194 = vmatprep.subr.bf16.mxu0 0
    %195 = vmatpush1.bf16.msra.mxu0 %v182
    %196 = vmatprep.subr.bf16.mxu0 0
    %197 = vmatpush1.bf16.msra.mxu0 %v183
    %198 = vmatprep.subr.bf16.mxu0 0
    %199 = vmatpush1.bf16.msra.mxu0 %v184
    %200 = vmatprep.subr.bf16.mxu0 0
    %201 = vmatpush1.bf16.msra.mxu0 %v185
    %202 = vmatprep.subr.bf16.mxu0 0
    %203 = vmatpush1.bf16.msra.mxu0 0
    %204 = vmatprep.subr.bf16.mxu0 0
    %205 = vmatpush1.bf16.msra.mxu0 0
    %206 = vmatprep.subr.bf16.mxu0 0
    %207 = vmatpush1.bf16.msra.mxu0 0
    %208 = vmatprep.subr.bf16.mxu0 0
    %209 = vmatpush1.bf16.msra.mxu0 0
    %210 = vmatprep.subr.bf16.mxu0 0
    %211 = vmatpush1.bf16.msra.mxu0 0
    %212 = vmatprep.subr.bf16.mxu0 0
    %213 = vmatpush1.bf16.msra.mxu0 0
    %214 = vmatprep.subr.bf16.mxu0 0
    %215 = vmatpush1.bf16.msra.mxu0 0
    %216 = vmatprep.subr.bf16.mxu0 0
    %217 = vmatpush1.bf16.msra.mxu0 0
    %218 = vmatprep.subr.bf16.mxu0 0
    %219 = vmatpush1.bf16.msra.mxu0 0
    %220 = vmatprep.subr.bf16.mxu0 0
    %221 = vmatpush1.bf16.msra.mxu0 0
    %222 = vmatprep.subr.bf16.mxu0 0
    %223 = vmatpush1.bf16.msra.mxu0 0
    %224 = vmatprep.subr.bf16.mxu0 0
    %225 = vmatpush1.bf16.msra.mxu0 0
    %226 = vmatprep.mubr.bf16.mxu0 0
    %227 = vmatmul.mubr.bf16.gmra.mrb[0].mxu0 %v192
    %v228 = vpop.f32.mrb[0].mxu0
    %v229 = vadd.f32 %v164, %v228
    %v230 = vpop.f32.mrb[0].mxu0
    %v231 = vpop.f32.mrb[0].mxu0
    %v232 = vpop.f32.mrb[0].mxu0
    %233 = vdwg.mxu0
    %v234 = vmax.f32 %v229, 0.0
    %v235 = vpack.c.bf16 %v234, %v234
    %v236 = vld [vmem:[#allocation7] sm:$0xf]
    %v237 = vld [vmem:[#allocation7 + $0x4] sm:$0xf]
    %v238 = vld [vmem:[#allocation7 + $0x8] sm:$0xf]
    %v239 = vld [vmem:[#allocation7 + $0xc] sm:$0xf]
    %v240 = vld [vmem:[#allocation7 + $0x10] sm:$0xf]
    %v241 = vld [vmem:[#allocation7 + $0x14] sm:$0xf]
    %v242 = vld [vmem:[#allocation7 + $0x18] sm:$0xf]
    %v243 = vld [vmem:[#allocation7 + $0x1c] sm:$0xf]
    %v244 = vld [vmem:[%s6] sm:$0x1]
    %v246 = vlaneseq
    %v247 = vshrl.u32 %v246, 7
    %v248 = vsub.s32 0, %v247
    %v249 = vrot.slane %v244, %v248
    %v259 = vunpack.c.l.b16 %v236
    %v260 = vunpack.c.l.b16 %v237
    %v261 = vunpack.c.l.b16 %v238
    %v262 = vunpack.c.l.b16 %v239
    %v263 = vunpack.c.l.b16 %v240
    %v264 = vunpack.c.l.b16 %v241
    %v265 = vunpack.c.l.b16 %v242
    %v266 = vunpack.c.l.b16 %v243
    %v267 = vpack.c.b16 %v260, %v259
    %v268 = vpack.c.b16 %v262, %v261
    %v269 = vpack.c.b16 %v264, %v263
    %v270 = vpack.c.b16 %v266, %v265
    %v276 = vsel %vm190, %v235, 0
    %278 = vmatprep.subr.bf16.mxu0 0
    %279 = vmatpush1.bf16.msra.mxu0 %v267
    %280 = vmatprep.subr.bf16.mxu0 0
    %281 = vmatpush1.bf16.msra.mxu0 %v268
    %282 = vmatprep.subr.bf16.mxu0 0
    %283 = vmatpush1.bf16.msra.mxu0 %v269
    %284 = vmatprep.subr.bf16.mxu0 0
    %285 = vmatpush1.bf16.msra.mxu0 %v270
    %286 = vmatprep.subr.bf16.mxu0 0
    %287 = vmatpush1.bf16.msra.mxu0 0
    %288 = vmatprep.subr.bf16.mxu0 0
    %289 = vmatpush1.bf16.msra.mxu0 0
    %290 = vmatprep.subr.bf16.mxu0 0
    %291 = vmatpush1.bf16.msra.mxu0 0
    %292 = vmatprep.subr.bf16.mxu0 0
    %293 = vmatpush1.bf16.msra.mxu0 0
    %294 = vmatprep.subr.bf16.mxu0 0
    %295 = vmatpush1.bf16.msra.mxu0 0
    %296 = vmatprep.subr.bf16.mxu0 0
    %297 = vmatpush1.bf16.msra.mxu0 0
    %298 = vmatprep.subr.bf16.mxu0 0
    %299 = vmatpush1.bf16.msra.mxu0 0
    %300 = vmatprep.subr.bf16.mxu0 0
    %301 = vmatpush1.bf16.msra.mxu0 0
    %302 = vmatprep.subr.bf16.mxu0 0
    %303 = vmatpush1.bf16.msra.mxu0 0
    %304 = vmatprep.subr.bf16.mxu0 0
    %305 = vmatpush1.bf16.msra.mxu0 0
    %306 = vmatprep.subr.bf16.mxu0 0
    %307 = vmatpush1.bf16.msra.mxu0 0
    %308 = vmatprep.subr.bf16.mxu0 0
    %309 = vmatpush1.bf16.msra.mxu0 0
    %310 = vmatprep.mubr.bf16.mxu0 0
    %311 = vmatmul.mubr.bf16.gmra.mrb[0].mxu0 %v276
    %v312 = vpop.f32.mrb[0].mxu0
    %v313 = vadd.f32 %v249, %v312
    %v314 = vpop.f32.mrb[0].mxu0
    %v315 = vpop.f32.mrb[0].mxu0
    %v316 = vpop.f32.mrb[0].mxu0
    %317 = vdwg.mxu0
    %v318 = vpack.c.bf16 %v313, %v313
    %319 = vst [vmem:[%s7] sm:$0xf] %v318
    // Predicated region
    $region46: #{simple_dnn_forward.1} parent=1 // pred_check
      _
    $region47: #{simple_dnn_forward.1} parent=1 // pred_check_branch
      %321 = sbr.rel (0) target = $region49
    $region48: #{simple_dnn_forward.1} parent=1 // pred_region
      _
    $region49: #{simple_dnn_forward.1} parent=1 // pred_fallthru
      _
    // Predicated region
    $region50: #{simple_dnn_forward.1} parent=1 // pred_check
      _
    $region51: #{simple_dnn_forward.1} parent=1 // pred_check_branch
      %323 = sbr.rel (0) target = $region53
    $region52: #{simple_dnn_forward.1} parent=1 // pred_region
      _
    $region53: #{simple_dnn_forward.1} parent=1 // pred_fallthru
      _
    %324 = vsyncpa [#allocation3], 1
    %325 = vsyncpa [#allocation5], 1
    %326 = vsyncpa [#allocation8], 1

</llo_original>
